<compile_context>
chip_gen: v7x
topology: tpu7x:2x2x1
jax: 0.10.0
libtpu: 0.0.40
codegen_flags: <defaults>
</compile_context>

<pallas_src>
import math

import jax
import jax.numpy as jnp
from jax.experimental import pallas as pl
from jax.experimental.pallas import tpu as pltpu


# ---------------------------------------------------------------------------
# Kernels
# ---------------------------------------------------------------------------

def _cross_plain_kernel(x0_ref, xi_ref, w_ref, b_ref, o_ref):
    """x0/xi/o tiles are (BM, F) with F a multiple of 128 (or the full feature
    dim); w/b are (1, F).  Per-row dot = lane reduce (VPU + XLU)."""
    xi = xi_ref[...].astype(jnp.float32)          # widen in-register only
    w = w_ref[...].astype(jnp.float32)
    s = jnp.sum(xi * w, axis=-1, keepdims=True)   # (BM, 1)
    x0 = x0_ref[...].astype(jnp.float32)
    b = b_ref[...].astype(jnp.float32)
    o_ref[...] = (s * x0 + b).astype(o_ref.dtype)


def _cross_folded_kernel(x0_ref, xi_ref, b_ref, wseg_ref, bcast_ref, o_ref):
    """Lane-dense path for small D: k original rows are packed into each
    kernel row, last dim F = k*D is a multiple of 128.

    wseg  (F, k): column j holds W over segment j, 0 elsewhere
                  -> (BM,F)@(F,k) yields the k per-row dot products.
    bcast (k, F): 0/1 matrix broadcasting dot j over its D-lane segment.
    Two skinny matmuls instead of one (F,F) one (MXU work ~2*128 flops/elem)."""
    xi = xi_ref[...].astype(jnp.float32)                                 # (BM, F)
    s = jnp.dot(xi, wseg_ref[...], preferred_element_type=jnp.float32)   # (BM, k)
    bc = jnp.dot(s, bcast_ref[...], preferred_element_type=jnp.float32)  # (BM, F)
    x0 = x0_ref[...].astype(jnp.float32)
    b = b_ref[...].astype(jnp.float32)
    o_ref[...] = (bc * x0 + b).astype(o_ref.dtype)


# ---------------------------------------------------------------------------
# Wrapper
# ---------------------------------------------------------------------------

def _round_up(x, m):
    return ((x + m - 1) // m) * m


def _vmem_budget_and_limit():
    """(working-set budget, scoped vmem limit) tuned per TPU generation."""
    try:
        cap = int(pltpu.get_tpu_info().vmem_capacity_bytes)
    except Exception:
        cap = 64 * 1024 * 1024                      # conservative (v7x-sized)
    if cap >= 96 * 1024 * 1024:                     # v5e / v6e: 128 MiB physical
        return 32 * 1024 * 1024, 64 * 1024 * 1024
    return 16 * 1024 * 1024, 32 * 1024 * 1024       # v7x: 64 MiB physical


def cross_interaction(x0, xi, weight, bias, *,
                      max_block_rows=1024,
                      target_grid_steps=8,
                      max_folded_lanes=2048):
    """CrossInteractionLayer forward: (X_i @ W^T) * X_0 + bias.

    x0, xi: (B, D); weight: (1, D); bias: (D,) -> (B, D)."""
    B, D = x0.shape
    assert xi.shape == (B, D)
    assert weight.shape == (1, D)
    assert bias.shape == (D,)

    dtype = x0.dtype
    itemsize = jnp.dtype(dtype).itemsize
    # Sublane granularity: 8 for 4-byte, 16 for 2-byte, 32 for 1-byte dtypes.
    sub = 8 if itemsize >= 4 else (16 if itemsize == 2 else 32)

    # --- Choose layout mode: lane-dense fold when D is not a multiple of 128.
    if D % 128 == 0:
        mode, k, F = "plain", 1, D
    else:
        k = math.lcm(D, 128) // D                   # power of two, <= 128
        F = k * D
        if F <= max_folded_lanes:
            mode = "folded"
        else:
            # Awkward D: keep stores lane-dense by padding the feature dim up
            # to the next multiple of 128 (zero lanes are inert: w=0, bias=0).
            mode, k, F = "plain", 1, _round_up(D, 128)

    # --- Build operands (no batch padding; ragged last grid block is masked
    #     by Pallas' boundary handling).
    pad_rows = 0
    if mode == "plain":
        if F != D:                                  # rare feature-pad fallback
            padc = F - D
            x0_f = jnp.pad(x0, ((0, 0), (0, padc)))
            xi_f = jnp.pad(xi, ((0, 0), (0, padc)))
            w_row = jnp.pad(weight.reshape(1, D), ((0, 0), (0, padc)))
            b_row = jnp.pad(bias.reshape(1, D), ((0, 0), (0, padc)))
        else:
            x0_f, xi_f = x0, xi
            w_row = weight.reshape(1, D)
            b_row = bias.reshape(1, D)
        rows_total = B
    else:
        # Minimal pad (< k rows) only if B is not a multiple of k; k is a
        # power of two <= 128 so common batch sizes skip this entirely.
        pad_rows = (-B) % k
        if pad_rows:
            x0_p = jnp.pad(x0, ((0, pad_rows), (0, 0)))
            xi_p = jnp.pad(xi, ((0, pad_rows), (0, 0)))
        else:
            x0_p, xi_p = x0, xi
        rows_total = (B + pad_rows) // k
        # Row-major fold: (B, D) -> (rows, k*D); k consecutive rows per tile row.
        x0_f = x0_p.reshape(rows_total, F)
        xi_f = xi_p.reshape(rows_total, F)
        b_row = jnp.tile(bias.reshape(1, D), (1, k))                 # (1, F)
        w_flat = jnp.tile(weight.reshape(1, D), (1, k)).reshape(F)   # (F,)
        seg_id = jnp.arange(F, dtype=jnp.int32) // D                 # (F,)
        cols = jnp.arange(k, dtype=jnp.int32)
        wseg = jnp.where(seg_id[:, None] == cols[None, :],
                         w_flat[:, None].astype(jnp.float32), 0.0)   # (F, k)
        bcast = (cols[:, None] == seg_id[None, :]).astype(jnp.float32)  # (k, F)

    # --- Batch tile from the VMEM budget.
    budget, vmem_limit = _vmem_budget_and_limit()
    if mode == "folded":
        param_bytes = 2 * (F * 4 + F * k * 4 + k * F * 4)   # b, wseg, bcast (x2 bufs)
    else:
        param_bytes = 2 * (2 * F * 4)                        # w, b rows
    stream_per_row = 3 * 2 * F * itemsize                    # x0, xi, out (x2 bufs)
    temps_per_row = 2 * F * 4                                 # in-kernel f32 temporaries
    per_row = stream_per_row + temps_per_row
    rows_fit = max((budget - param_bytes) // per_row, sub)
    block_rows = int(min(rows_fit, max_block_rows))

    # Target ~target_grid_steps grid steps (>= 4 per TC on v7x) but never
    # shrink tiles below 512 rows just to create steps.
    per_step = _round_up(pl.cdiv(rows_total, target_grid_steps), sub)
    block_rows = min(block_rows, max(512, per_step))

    if rows_total <= block_rows:
        block_rows = rows_total        # single full-extent block (always legal)
    else:
        block_rows = max(sub, (block_rows // sub) * sub)
    grid = (pl.cdiv(rows_total, block_rows),)

    row_spec = pl.BlockSpec((block_rows, F), lambda i: (i, 0))
    vec_spec = pl.BlockSpec((1, F), lambda i: (0, 0))          # resident param

    if mode == "folded":
        kernel = _cross_folded_kernel
        in_specs = [row_spec, row_spec, vec_spec,
                    pl.BlockSpec((F, k), lambda i: (0, 0)),
                    pl.BlockSpec((k, F), lambda i: (0, 0))]
        args = [x0_f, xi_f, b_row, wseg, bcast]
    else:
        kernel = _cross_plain_kernel
        in_specs = [row_spec, row_spec, vec_spec, vec_spec]
        args = [x0_f, xi_f, w_row, b_row]

    out_f = pl.pallas_call(
        kernel,
        out_shape=jax.ShapeDtypeStruct((rows_total, F), dtype),
        grid_spec=pltpu.PrefetchScalarGridSpec(
            num_scalar_prefetch=0,
            grid=grid,
            in_specs=in_specs,
            out_specs=row_spec,
        ),
        compiler_params=pltpu.CompilerParams(
            dimension_semantics=("parallel",),
            vmem_limit_bytes=vmem_limit,
        ),
    )(*args)

    if mode == "plain":
        return out_f if F == D else out_f[:, :D]
    out = out_f.reshape(rows_total * k, D)
    return out[:B] if pad_rows else out


# ---------------------------------------------------------------------------
# Demo / self-check
# ---------------------------------------------------------------------------

if __name__ == "__main__":
    keys = jax.random.split(jax.random.PRNGKey(0), 12)

    def ref_fn(x0, xi, w, b):
        return (xi @ w.T) * x0 + b[None, :]

    # --- Case 1: small D -> folded lane-dense path.  batch=16, input_dim=32.
    B, D = 16, 32
    x0 = jax.random.normal(keys[0], (B, D), dtype=jnp.float32)
    xi = jax.random.normal(keys[1], (B, D), dtype=jnp.float32)
    bound = 1.0 / math.sqrt(D)
    w = jax.random.uniform(keys[2], (1, D), dtype=jnp.float32,
                           minval=-bound, maxval=bound)
    b = 0.1 * jax.random.normal(keys[3], (D,), dtype=jnp.float32)
    out = jax.block_until_ready(cross_interaction(x0, xi, w, b))
    assert out.shape == (B, D)
    assert jnp.allclose(out, ref_fn(x0, xi, w, b), atol=1e-3, rtol=1e-3), \
        "mismatch (folded)"

    # --- Case 2: D multiple of 128 -> plain path, single full-extent block.
    B2, D2 = 16, 128
    x0_2 = jax.random.normal(keys[4], (B2, D2), dtype=jnp.float32)
    xi_2 = jax.random.normal(keys[5], (B2, D2), dtype=jnp.float32)
    bound2 = 1.0 / math.sqrt(D2)
    w_2 = jax.random.uniform(keys[6], (1, D2), dtype=jnp.float32,
                             minval=-bound2, maxval=bound2)
    b_2 = jnp.zeros((D2,), dtype=jnp.float32)
    out2 = jax.block_until_ready(cross_interaction(x0_2, xi_2, w_2, b_2))
    assert out2.shape == (B2, D2)
    assert jnp.allclose(out2, ref_fn(x0_2, xi_2, w_2, b_2),
                        atol=1e-3, rtol=1e-3), "mismatch (plain)"

    # --- Case 3: ragged grid (no batch padding): 20 rows with 8-row tiles ->
    #     3 grid steps, last block masked by Pallas' boundary handling.
    B3, D3 = 20, 128
    x0_3 = jax.random.normal(keys[7], (B3, D3), dtype=jnp.float32)
    xi_3 = jax.random.normal(keys[8], (B3, D3), dtype=jnp.float32)
    w_3 = jax.random.uniform(keys[9], (1, D3), dtype=jnp.float32,
                             minval=-bound2, maxval=bound2)
    b_3 = 0.05 * jax.random.normal(keys[10], (D3,), dtype=jnp.float32)
    out3 = jax.block_until_ready(
        cross_interaction(x0_3, xi_3, w_3, b_3, max_block_rows=8))
    assert out3.shape == (B3, D3)
    assert jnp.allclose(out3, ref_fn(x0_3, xi_3, w_3, b_3),
                        atol=1e-3, rtol=1e-3), "mismatch (ragged)"

    print("KERNEL_OK")
</pallas_src>

<mosaic_0001>
module attributes {stable_mosaic.version = 11 : i64} {
  func.func @_cross_folded_kernel(%arg0: i32, %arg1: memref<4x128xf32, #tpu.memory_space<vmem>>, %arg2: memref<4x128xf32, #tpu.memory_space<vmem>>, %arg3: memref<1x128xf32, #tpu.memory_space<vmem>>, %arg4: memref<128x4xf32, #tpu.memory_space<vmem>>, %arg5: memref<4x128xf32, #tpu.memory_space<vmem>>, %arg6: memref<4x128xf32, #tpu.memory_space<vmem>>) attributes {dimension_semantics = [#tpu.dimension_semantics<parallel>], iteration_bounds = array<i64: 1>, scalar_prefetch = 0 : i64, scratch_operands = 0 : i64, tpu.core_type = #tpu.core_type<tc>, window_params = [{transform_indices = @transform_0, window_bounds = array<i64: 4, 128>}, {transform_indices = @transform_1, window_bounds = array<i64: 4, 128>}, {pipeline_mode = #tpu.pipeline_mode<synchronous>, transform_indices = @transform_2, window_bounds = array<i64: 1, 128>}, {pipeline_mode = #tpu.pipeline_mode<synchronous>, transform_indices = @transform_3, window_bounds = array<i64: 128, 4>}, {pipeline_mode = #tpu.pipeline_mode<synchronous>, transform_indices = @transform_4, window_bounds = array<i64: 4, 128>}, {transform_indices = @transform_5, window_bounds = array<i64: 4, 128>}]} {
    %c0 = arith.constant 0 : index
    %c0_0 = arith.constant 0 : index
    %0 = vector.load %arg2[%c0, %c0_0] : memref<4x128xf32, #tpu.memory_space<vmem>>, vector<4x128xf32>
    %c0_1 = arith.constant 0 : index
    %c0_2 = arith.constant 0 : index
    %1 = vector.load %arg4[%c0_1, %c0_2] : memref<128x4xf32, #tpu.memory_space<vmem>>, vector<128x4xf32>
    %cst = arith.constant dense<0.000000e+00> : vector<4x4xf32>
    %2 = tpu.matmul %0, %1, %cst {dimension_numbers = #tpu.dot_dimension_numbers<[1], [0], [0], [1], [0, 0, 1, 1], [], []>} : vector<4x128xf32>, vector<128x4xf32>, vector<4x4xf32> -> vector<4x4xf32>
    %c0_3 = arith.constant 0 : index
    %c0_4 = arith.constant 0 : index
    %3 = vector.load %arg5[%c0_3, %c0_4] : memref<4x128xf32, #tpu.memory_space<vmem>>, vector<4x128xf32>
    %cst_5 = arith.constant dense<0.000000e+00> : vector<4x128xf32>
    %4 = tpu.matmul %2, %3, %cst_5 {dimension_numbers = #tpu.dot_dimension_numbers<[1], [0], [0], [1], [0, 0, 1, 1], [], []>} : vector<4x4xf32>, vector<4x128xf32>, vector<4x128xf32> -> vector<4x128xf32>
    %c0_6 = arith.constant 0 : index
    %c0_7 = arith.constant 0 : index
    %5 = vector.load %arg1[%c0_6, %c0_7] : memref<4x128xf32, #tpu.memory_space<vmem>>, vector<4x128xf32>
    %c0_8 = arith.constant 0 : index
    %c0_9 = arith.constant 0 : index
    %6 = vector.load %arg3[%c0_8, %c0_9] : memref<1x128xf32, #tpu.memory_space<vmem>>, vector<1x128xf32>
    %7 = arith.mulf %4, %5 : vector<4x128xf32>
    %8 = vector.broadcast %6 : vector<1x128xf32> to vector<4x128xf32>
    %9 = arith.addf %7, %8 : vector<4x128xf32>
    %c0_10 = arith.constant 0 : index
    %c0_11 = arith.constant 0 : index
    %10 = vector.load %arg6[%c0_10, %c0_11] : memref<4x128xf32, #tpu.memory_space<vmem>>, vector<4x128xf32>
    tpu.vector_store %arg6[%c0_10, %c0_11], %9 {strides = array<i32>} : memref<4x128xf32, #tpu.memory_space<vmem>>, vector<4x128xf32>,
    return
  }
  func.func @transform_0(%arg0: i32) -> (i32, i32) {
    %c0_i32 = arith.constant 0 : i32
    %c0_i32_0 = arith.constant 0 : i32
    return %arg0, %c0_i32 : i32, i32
  }
  func.func @transform_1(%arg0: i32) -> (i32, i32) {
    %c0_i32 = arith.constant 0 : i32
    %c0_i32_0 = arith.constant 0 : i32
    return %arg0, %c0_i32 : i32, i32
  }
  func.func @transform_2(%arg0: i32) -> (i32, i32) {
    %c0_i32 = arith.constant 0 : i32
    %c0_i32_0 = arith.constant 0 : i32
    %c0_i32_1 = arith.constant 0 : i32
    return %c0_i32, %c0_i32_0 : i32, i32
  }
  func.func @transform_3(%arg0: i32) -> (i32, i32) {
    %c0_i32 = arith.constant 0 : i32
    %c0_i32_0 = arith.constant 0 : i32
    %c0_i32_1 = arith.constant 0 : i32
    return %c0_i32, %c0_i32_0 : i32, i32
  }
  func.func @transform_4(%arg0: i32) -> (i32, i32) {
    %c0_i32 = arith.constant 0 : i32
    %c0_i32_0 = arith.constant 0 : i32
    %c0_i32_1 = arith.constant 0 : i32
    return %c0_i32, %c0_i32_0 : i32, i32
  }
  func.func @transform_5(%arg0: i32) -> (i32, i32) {
    %c0_i32 = arith.constant 0 : i32
    %c0_i32_0 = arith.constant 0 : i32
    return %arg0, %c0_i32 : i32, i32
  }
}

</mosaic_0001>

<llo_original>
// kernel: tpu_custom_call.1
$region0: #{tpu_custom_call.1}
  #allocation0 [shape = 'u32[]', space=smem, size = 0x4, offset = 0x4, fixed_abs, tag = 'smem constant byte address 0x4 - core index']
  #allocation1 [shape = 'u32[144,128]{1,0:T(1,128)}', space=vmem, size = 0x12000, scoped, tag = 'internal scratch']
  %s0 = inlined_call_operand.vmem [shape: f32[4,128], index: 0, kind: input, shape index: {}]
  %s1 = inlined_call_operand.vmem [shape: f32[4,128], index: 1, kind: input, shape index: {}]
  %s2 = inlined_call_operand.vmem [shape: f32[1,128], index: 2, kind: input, shape index: {}]
  %s3 = inlined_call_operand.vmem [shape: f32[128,4], index: 3, kind: input, shape index: {}]
  %s4 = inlined_call_operand.vmem [shape: f32[4,128], index: 4, kind: input, shape index: {}]
  %s5 = inlined_call_operand.hbm [shape: f32[4,128], index: 5, kind: output, shape index: {}]
  %s6 = sld [smem:[#allocation0]]
  $region30: #{tpu_custom_call.1} parent=0
    _
  %s8 = ssub.s32 1, %s6
  %s9 = scalar_select 0, %s8, %s6
  $region1: #{tpu_custom_call.1} parent=0
    #allocation2 [shape = 'u8[2048]{0}', space=vmem, size = 0x800, scoped, tag = 'output window, operand 0, single buffered']
    #allocation3 [shape = 's32[1]{0}', space=sflag, size = 0x4, scoped, tag = 'scoped memory for tpu_custom_call.1']
    %10 = vsyncpa [#allocation3], 0
    // Predicated region
    $region2: #{tpu_custom_call.1} parent=1 // pred_check
      _
    $region3: #{tpu_custom_call.1} parent=1 // pred_check_branch
      %12 = sbr.rel (0) target = $region5
    $region4: #{tpu_custom_call.1} parent=1 // pred_region
      _
    $region5: #{tpu_custom_call.1} parent=1 // pred_fallthru
      _
    // Predicated region
    $region6: #{tpu_custom_call.1} parent=1 // pred_check
      _
    $region7: #{tpu_custom_call.1} parent=1 // pred_check_branch
      %14 = sbr.rel (0) target = $region9
    $region8: #{tpu_custom_call.1} parent=1 // pred_region
      _
    $region9: #{tpu_custom_call.1} parent=1 // pred_fallthru
      _
    // Predicated region
    $region10: #{tpu_custom_call.1} parent=1 // pred_check
      _
    $region11: #{tpu_custom_call.1} parent=1 // pred_check_branch
      %16 = sbr.rel (0) target = $region13
    $region12: #{tpu_custom_call.1} parent=1 // pred_region
      _
    $region13: #{tpu_custom_call.1} parent=1 // pred_fallthru
      _
    // Predicated region
    $region14: #{tpu_custom_call.1} parent=1 // pred_check
      _
    $region15: #{tpu_custom_call.1} parent=1 // pred_check_branch
      %18 = sbr.rel (0) target = $region17
    $region16: #{tpu_custom_call.1} parent=1 // pred_region
      _
    $region17: #{tpu_custom_call.1} parent=1 // pred_fallthru
      _
    // Predicated region
    $region18: #{tpu_custom_call.1} parent=1 // pred_check
      _
    $region19: #{tpu_custom_call.1} parent=1 // pred_check_branch
      %20 = sbr.rel (0) target = $region21
    $region20: #{tpu_custom_call.1} parent=1 // pred_region
      _
    $region21: #{tpu_custom_call.1} parent=1 // pred_fallthru
      _
    %v21 = vld [vmem:[%s1] sm:$0xf]
    %v22 = vld [vmem:[%s3] sm:$0xff]
    %v23 = vld [vmem:[%s3 + $0x8] sm:$0xff]
    %v24 = vld [vmem:[%s3 + $0x10] sm:$0xff]
    %v25 = vld [vmem:[%s3 + $0x18] sm:$0xff]
    %v26 = vld [vmem:[%s3 + $0x20] sm:$0xff]
    %v27 = vld [vmem:[%s3 + $0x28] sm:$0xff]
    %v28 = vld [vmem:[%s3 + $0x30] sm:$0xff]
    %v29 = vld [vmem:[%s3 + $0x38] sm:$0xff]
    %v30 = vld [vmem:[%s3 + $0x40] sm:$0xff]
    %v31 = vld [vmem:[%s3 + $0x48] sm:$0xff]
    %v32 = vld [vmem:[%s3 + $0x50] sm:$0xff]
    %v33 = vld [vmem:[%s3 + $0x58] sm:$0xff]
    %v34 = vld [vmem:[%s3 + $0x60] sm:$0xff]
    %v35 = vld [vmem:[%s3 + $0x68] sm:$0xff]
    %v36 = vld [vmem:[%s3 + $0x70] sm:$0xff]
    %v37 = vld [vmem:[%s3 + $0x78] sm:$0xff]
    %38 = vmatprep.subr.mxu0 0.0
    %39 = vmatpush1.msra.mxu0 %v22
    %40 = vmatprep.subr.mxu0 0.0
    %41 = vmatpush1.msra.mxu0 %v23
    %42 = vmatprep.subr.mxu0 0.0
    %43 = vmatpush1.msra.mxu0 %v24
    %44 = vmatprep.subr.mxu0 0.0
    %45 = vmatpush1.msra.mxu0 %v25
    %46 = vmatprep.subr.mxu0 0.0
    %47 = vmatpush1.msra.mxu0 %v26
    %48 = vmatprep.subr.mxu0 0.0
    %49 = vmatpush1.msra.mxu0 %v27
    %50 = vmatprep.subr.mxu0 0.0
    %51 = vmatpush1.msra.mxu0 %v28
    %52 = vmatprep.subr.mxu0 0.0
    %53 = vmatpush1.msra.mxu0 %v29
    %54 = vmatprep.subr.mxu0 0.0
    %55 = vmatpush1.msra.mxu0 %v30
    %56 = vmatprep.subr.mxu0 0.0
    %57 = vmatpush1.msra.mxu0 %v31
    %58 = vmatprep.subr.mxu0 0.0
    %59 = vmatpush1.msra.mxu0 %v32
    %60 = vmatprep.subr.mxu0 0.0
    %61 = vmatpush1.msra.mxu0 %v33
    %62 = vmatprep.subr.mxu0 0.0
    %63 = vmatpush1.msra.mxu0 %v34
    %64 = vmatprep.subr.mxu0 0.0
    %65 = vmatpush1.msra.mxu0 %v35
    %66 = vmatprep.subr.mxu0 0.0
    %67 = vmatpush1.msra.mxu0 %v36
    %68 = vmatprep.subr.mxu0 0.0
    %69 = vmatpush1.msra.mxu0 %v37
    %70 = vmatprep.subr.mxu0 0.0
    %71 = vmatpush1.msra.mxu0 0.0
    %72 = vmatprep.subr.mxu0 0.0
    %73 = vmatpush1.msra.mxu0 0.0
    %74 = vmatprep.subr.mxu0 0.0
    %75 = vmatpush1.msra.mxu0 0.0
    %76 = vmatprep.subr.mxu0 0.0
    %77 = vmatpush1.msra.mxu0 0.0
    %78 = vmatprep.subr.mxu0 0.0
    %79 = vmatpush1.msra.mxu0 0.0
    %80 = vmatprep.subr.mxu0 0.0
    %81 = vmatpush1.msra.mxu0 0.0
    %82 = vmatprep.subr.mxu0 0.0
    %83 = vmatpush1.msra.mxu0 0.0
    %84 = vmatprep.subr.mxu0 0.0
    %85 = vmatpush1.msra.mxu0 0.0
    %86 = vmatprep.subr.mxu0 0.0
    %87 = vmatpush1.msra.mxu0 0.0
    %88 = vmatprep.subr.mxu0 0.0
    %89 = vmatpush1.msra.mxu0 0.0
    %90 = vmatprep.subr.mxu0 0.0
    %91 = vmatpush1.msra.mxu0 0.0
    %92 = vmatprep.subr.mxu0 0.0
    %93 = vmatpush1.msra.mxu0 0.0
    %94 = vmatprep.subr.mxu0 0.0
    %95 = vmatpush1.msra.mxu0 0.0
    %96 = vmatprep.subr.mxu0 0.0
    %97 = vmatpush1.msra.mxu0 0.0
    %98 = vmatprep.subr.mxu0 0.0
    %99 = vmatpush1.msra.mxu0 0.0
    %100 = vmatprep.subr.mxu0 0.0
    %101 = vmatpush1.msra.mxu0 0.0
    %102 = vmatprep.mubr.f32.mxu0 0.0
    %103 = vmatmul.mubr.f32.gmra.mrb[0].mxu0 %v21
    %v104 = vpop.f32.mrb[0].mxu0
    %v105 = vadd.f32 0.0, %v104
    %v106 = vpop.f32.mrb[0].mxu0
    %107 = vdwg.mxu0
    %v108 = vld [vmem:[%s4] sm:$0xf]
    %vm109 = vcmask 31744
    %v111 = vsel %vm109, %v105, 0
    %vm113 = vcmask 1043456
    %v115 = vsel %vm113, %v108, 0
    %117 = vmatprep.subr.mxu0 0.0
    %118 = vmatpush1.msra.mxu0 %v115
    %119 = vmatprep.subr.mxu0 0.0
    %120 = vmatpush1.msra.mxu0 0.0
    %121 = vmatprep.subr.mxu0 0.0
    %122 = vmatpush1.msra.mxu0 0.0
    %123 = vmatprep.subr.mxu0 0.0
    %124 = vmatpush1.msra.mxu0 0.0
    %125 = vmatprep.subr.mxu0 0.0
    %126 = vmatpush1.msra.mxu0 0.0
    %127 = vmatprep.subr.mxu0 0.0
    %128 = vmatpush1.msra.mxu0 0.0
    %129 = vmatprep.subr.mxu0 0.0
    %130 = vmatpush1.msra.mxu0 0.0
    %131 = vmatprep.subr.mxu0 0.0
    %132 = vmatpush1.msra.mxu0 0.0
    %133 = vmatprep.subr.mxu0 0.0
    %134 = vmatpush1.msra.mxu0 0.0
    %135 = vmatprep.subr.mxu0 0.0
    %136 = vmatpush1.msra.mxu0 0.0
    %137 = vmatprep.subr.mxu0 0.0
    %138 = vmatpush1.msra.mxu0 0.0
    %139 = vmatprep.subr.mxu0 0.0
    %140 = vmatpush1.msra.mxu0 0.0
    %141 = vmatprep.subr.mxu0 0.0
    %142 = vmatpush1.msra.mxu0 0.0
    %143 = vmatprep.subr.mxu0 0.0
    %144 = vmatpush1.msra.mxu0 0.0
    %145 = vmatprep.subr.mxu0 0.0
    %146 = vmatpush1.msra.mxu0 0.0
    %147 = vmatprep.subr.mxu0 0.0
    %148 = vmatpush1.msra.mxu0 0.0
    %149 = vmatprep.subr.mxu0 0.0
    %150 = vmatpush1.msra.mxu0 0.0
    %151 = vmatprep.subr.mxu0 0.0
    %152 = vmatpush1.msra.mxu0 0.0
    %153 = vmatprep.subr.mxu0 0.0
    %154 = vmatpush1.msra.mxu0 0.0
    %155 = vmatprep.subr.mxu0 0.0
    %156 = vmatpush1.msra.mxu0 0.0
    %157 = vmatprep.subr.mxu0 0.0
    %158 = vmatpush1.msra.mxu0 0.0
    %159 = vmatprep.subr.mxu0 0.0
    %160 = vmatpush1.msra.mxu0 0.0
    %161 = vmatprep.subr.mxu0 0.0
    %162 = vmatpush1.msra.mxu0 0.0
    %163 = vmatprep.subr.mxu0 0.0
    %164 = vmatpush1.msra.mxu0 0.0
    %165 = vmatprep.subr.mxu0 0.0
    %166 = vmatpush1.msra.mxu0 0.0
    %167 = vmatprep.subr.mxu0 0.0
    %168 = vmatpush1.msra.mxu0 0.0
    %169 = vmatprep.subr.mxu0 0.0
    %170 = vmatpush1.msra.mxu0 0.0
    %171 = vmatprep.subr.mxu0 0.0
    %172 = vmatpush1.msra.mxu0 0.0
    %173 = vmatprep.subr.mxu0 0.0
    %174 = vmatpush1.msra.mxu0 0.0
    %175 = vmatprep.subr.mxu0 0.0
    %176 = vmatpush1.msra.mxu0 0.0
    %177 = vmatprep.subr.mxu0 0.0
    %178 = vmatpush1.msra.mxu0 0.0
    %179 = vmatprep.subr.mxu0 0.0
    %180 = vmatpush1.msra.mxu0 0.0
    %181 = vmatprep.mubr.f32.mxu0 0.0
    %182 = vmatmul.mubr.f32.gmra.mrb[0].mxu0 %v111
    %v183 = vpop.f32.mrb[0].mxu0
    %v184 = vadd.f32 0.0, %v183
    %v185 = vpop.f32.mrb[0].mxu0
    %186 = vdwg.mxu0
    %v187 = vld [vmem:[%s0] sm:$0xf]
    %v188 = vld [vmem:[%s2] sm:$0x1]
    %v189 = vmul.f32 %v184, %v187
    %v191 = vlaneseq
    %v192 = vshrl.u32 %v191, 7
    %v193 = vsub.s32 0, %v192
    %v194 = vrot.slane %v188, %v193
    %v196 = vadd.f32 %v189, %v194
    %197 = vst [vmem:[#allocation2] sm:$0xf] %v196
    // Predicated region
    $region22: #{tpu_custom_call.1} parent=1 // pred_check
      _
    $region23: #{tpu_custom_call.1} parent=1 // pred_check_branch
      %199 = sbr.rel (0) target = $region25
    $region24: #{tpu_custom_call.1} parent=1 // pred_region
      %s201 = ssub.s32 64, 64
      %202 = vsyncadd [#allocation3], %s201
      %s204 = sshll.u32 [#allocation2], 4
      %s205 = int_to_ptr.vmem [resolvable:$true] %s204
      %207 = dma.vmem_to_hbm [thread:$0]  %s205, 64, %s5, [#allocation3]
    $region25: #{tpu_custom_call.1} parent=1 // pred_fallthru
      _
    // Predicated region
    $region26: #{tpu_custom_call.1} parent=1 // pred_check
      _
    $region27: #{tpu_custom_call.1} parent=1 // pred_check_branch
      %209 = sbr.rel (0) target = $region29
    $region28: #{tpu_custom_call.1} parent=1 // pred_region
      %210 = dma.done [#allocation3], 64
    $region29: #{tpu_custom_call.1} parent=1 // pred_fallthru
      _
    %211 = vsyncpa [#allocation3], 1

</llo_original>
